<compile_context>
chip_gen: v7x
topology: tpu7x:2x2x1
jax: 0.10.0
libtpu: 0.0.40
codegen_flags: <defaults>
</compile_context>

<pallas_src>
import jax
import jax.numpy as jnp
import numpy as np
from jax.experimental import pallas as pl
from jax.experimental.pallas import tpu as pltpu

_LN_EPS = 1e-5  # nn.LayerNorm default

# Flipped to False at runtime if this jax build rejects single-buffered
# (pl.Buffered(1)) resident operands.
_RESIDENT_SINGLE_BUFFER = True


def _ln_project_kernel(x_ref, w_ref, b_ref, o_ref):
    """Fused LayerNorm (last axis, affine pre-folded into w/b) + linear.

    x_ref: (TM, K)   token-row tile
    w_ref: (K, OUT)  folded projection weight (VMEM-resident, bf16)
    b_ref: (1, OUT)  folded projection bias   (VMEM-resident, f32)
    o_ref: (TM, OUT)
    """
    x = x_ref[...].astype(jnp.float32)
    inv_k = 1.0 / x.shape[-1]
    # One-pass statistics: the two XLU reductions are independent.
    s = jnp.sum(x, axis=-1, keepdims=True)
    ss = jnp.sum(x * x, axis=-1, keepdims=True)
    mean = s * inv_k
    var = ss * inv_k - mean * mean                      # biased var (torch LN)
    xn = (x - mean) * jax.lax.rsqrt(var + _LN_EPS)
    xn = xn.astype(w_ref.dtype)                         # bf16 MXU path
    acc = jnp.dot(xn, w_ref[...], preferred_element_type=jnp.float32)
    o_ref[...] = (acc + b_ref[...].astype(jnp.float32)).astype(o_ref.dtype)


def _round_up(n, m):
    return -(-n // m) * m


def _pick_tile(rows, requested):
    """Row tile: multiple of 8, >=2 grid steps when possible (megacore)."""
    tm = max(8, requested - requested % 8)
    two_step = ((rows // 2) // 8) * 8
    if two_step >= 8:
        tm = min(tm, two_step)
    if rows <= tm:
        tm = rows                     # single full-extent block (always legal)
    return tm


def _fused_ln_project(x2d, w, b2d, *, row_tile, out_dtype):
    """pallas_call wrapper: rows of x2d -> LN(last axis) @ w + b."""
    global _RESIDENT_SINGLE_BUFFER
    rows, K = x2d.shape
    OUT = int(w.shape[1])
    tm = _pick_tile(rows, row_tile)
    grid = (pl.cdiv(rows, tm),)       # ragged last block handled by Pallas

    x_item = x2d.dtype.itemsize
    w_item = w.dtype.itemsize
    o_item = jnp.dtype(out_dtype).itemsize
    need = (2 * tm * K * x_item           # double-buffered input tile
            + 2 * tm * OUT * o_item       # double-buffered output tile
            + 2 * K * OUT * w_item        # weight (worst case double-buffered)
            + 2 * OUT * 4                 # bias
            + tm * (K + OUT) * 4)         # f32 intermediates / spill slack
    vmem_limit = int(min(64 << 20, max(16 << 20, need * 5 // 4 + (2 << 20))))

    cost = pl.CostEstimate(
        flops=2 * rows * K * OUT,
        transcendentals=rows,             # one rsqrt per row
        bytes_accessed=(rows * K * x_item + K * OUT * w_item
                        + OUT * 4 + rows * OUT * o_item))

    def build(single_buffer_resident):
        pm = ({"pipeline_mode": pl.Buffered(1)}
              if single_buffer_resident else {})
        return pl.pallas_call(
            _ln_project_kernel,
            out_shape=jax.ShapeDtypeStruct((rows, OUT), out_dtype),
            grid_spec=pl.GridSpec(
                grid=grid,
                in_specs=[
                    pl.BlockSpec((tm, K), lambda i: (i, 0)),        # row tile
                    pl.BlockSpec((K, OUT), lambda i: (0, 0), **pm), # weight
                    pl.BlockSpec((1, OUT), lambda i: (0, 0), **pm), # bias
                ],
                out_specs=pl.BlockSpec((tm, OUT), lambda i: (i, 0)),
            ),
            compiler_params=pltpu.CompilerParams(
                dimension_semantics=("parallel",),
                vmem_limit_bytes=vmem_limit),
            cost_estimate=cost,
        )

    if _RESIDENT_SINGLE_BUFFER:
        try:
            return build(True)(x2d, w, b2d)
        except Exception:
            _RESIDENT_SINGLE_BUFFER = False   # fall back to default buffering
    return build(False)(x2d, w, b2d)


def patch_merging_forward(x, H, W, det_token_num, gamma, beta, w_red,
                          *, row_tile=512, param_dtype=jnp.bfloat16):
    """JAX/Pallas equivalent of PatchMerging.forward(x, H, W)."""
    B, L, C = x.shape
    assert L == H * W + det_token_num, "input feature has wrong size"
    assert w_red.shape[0] == 4 * C
    out_dim = int(w_red.shape[1])

    # ---- parameter folding (tiny, f32) --------------------------------------
    gamma32 = gamma.astype(jnp.float32)
    beta32 = beta.astype(jnp.float32)
    w32 = w_red.astype(jnp.float32)
    w_fold = gamma32[:, None] * w32                      # (4C, out)
    b_fold = beta32 @ w32                                # (out,)
    w_det = w_fold.reshape(4, C, out_dim).sum(axis=0)    # det path: (C, out)

    # Lane-dense output; slice only needed when out_dim is not 128-aligned.
    out_cols = out_dim if out_dim % 128 == 0 else _round_up(out_dim, 128)
    if out_cols != out_dim:
        pad_c = out_cols - out_dim
        w_fold = jnp.pad(w_fold, ((0, 0), (0, pad_c)))
        w_det = jnp.pad(w_det, ((0, 0), (0, pad_c)))
        b_fold = jnp.pad(b_fold, (0, pad_c))
    w_fold = w_fold.astype(param_dtype)
    w_det = w_det.astype(param_dtype)
    b2d = b_fold.reshape(1, out_cols).astype(jnp.float32)

    # ---- patch-token path ----------------------------------------------------
    patches = x[:, : H * W, :].reshape(B, H, W, C)
    det = x[:, H * W:, :]
    pad_h, pad_w = H % 2, W % 2
    if pad_h or pad_w:                       # matches F.pad(x, (0,0, 0,W%2, 0,H%2))
        patches = jnp.pad(patches, ((0, 0), (0, pad_h), (0, pad_w), (0, 0)))
    Hp, Wp = H + pad_h, W + pad_w
    Np = (Hp // 2) * (Wp // 2)
    # 2x2 gather as one reshape/transpose; channel order (wp, hp, C) matches
    # torch.cat([x0, x1, x2, x3], -1).
    merged = patches.reshape(B, Hp // 2, 2, Wp // 2, 2, C)
    merged = merged.transpose(0, 1, 3, 4, 2, 5).reshape(B * Np, 4 * C)

    out_patch = _fused_ln_project(merged, w_fold, b2d,
                                  row_tile=row_tile, out_dtype=x.dtype)
    if out_cols != out_dim:
        out_patch = out_patch[:, :out_dim]
    out_patch = out_patch.reshape(B, Np, out_dim)

    # ---- det-token path (repeat(1,1,4)+LN(4C)+proj folded into LN(C)+proj) ---
    if det_token_num > 0:
        det2d = det.reshape(B * det_token_num, C)
        out_det = _fused_ln_project(det2d, w_det, b2d,
                                    row_tile=row_tile, out_dtype=x.dtype)
        if out_cols != out_dim:
            out_det = out_det[:, :out_dim]
        out_det = out_det.reshape(B, det_token_num, out_dim)
        return jnp.concatenate([out_patch, out_det], axis=1)
    return out_patch


def _reference(x, H, W, det_token_num, gamma, beta, w_red):
    """Pure-JAX reference mirroring the torch module (f32 end to end)."""
    B, L, C = x.shape
    patches = x[:, : H * W, :].reshape(B, H, W, C)
    det = x[:, H * W:, :]
    pad_h, pad_w = H % 2, W % 2
    if pad_h or pad_w:
        patches = jnp.pad(patches, ((0, 0), (0, pad_h), (0, pad_w), (0, 0)))
    x0 = patches[:, 0::2, 0::2, :]
    x1 = patches[:, 1::2, 0::2, :]
    x2 = patches[:, 0::2, 1::2, :]
    x3 = patches[:, 1::2, 1::2, :]
    merged = jnp.concatenate([x0, x1, x2, x3], axis=-1).reshape(B, -1, 4 * C)
    tokens = jnp.concatenate([merged, jnp.tile(det, (1, 1, 4))], axis=1)
    mean = jnp.mean(tokens, axis=-1, keepdims=True)
    var = jnp.mean((tokens - mean) ** 2, axis=-1, keepdims=True)
    xn = (tokens - mean) * jax.lax.rsqrt(var + _LN_EPS) * gamma + beta
    return jnp.einsum("bnc,cd->bnd", xn, w_red)


if __name__ == "__main__":
    # dim = 32, expand=True  =>  norm over 4*dim = 128, reduction 128 -> 64
    B, H, W, C, det_n = 2, 16, 16, 32, 4

    key = jax.random.PRNGKey(0)
    k_x, k_w, k_g, k_b, k_x2 = jax.random.split(key, 5)
    x = jax.random.normal(k_x, (B, H * W + det_n, C), dtype=jnp.float32)
    gamma = 1.0 + 0.1 * jax.random.normal(k_g, (4 * C,), jnp.float32)
    beta = 0.1 * jax.random.normal(k_b, (4 * C,), jnp.float32)
    w_red = 0.02 * jax.random.normal(k_w, (4 * C, 2 * C), jnp.float32)

    ref = _reference(x, H, W, det_n, gamma, beta, w_red)

    # bf16 folded weights (recommended path) -- relaxed tolerance.
    out = jax.block_until_ready(
        patch_merging_forward(x, H, W, det_n, gamma, beta, w_red))
    np.testing.assert_allclose(np.asarray(out), np.asarray(ref),
                               rtol=2e-2, atol=2e-2)
    assert out.shape == (B, (H // 2) * (W // 2) + det_n, 2 * C)

    # f32 weights validate the gamma/beta + det-token algebraic fold tightly.
    out_f32 = jax.block_until_ready(
        patch_merging_forward(x, H, W, det_n, gamma, beta, w_red,
                              param_dtype=jnp.float32))
    np.testing.assert_allclose(np.asarray(out_f32), np.asarray(ref),
                               rtol=2e-3, atol=2e-3)

    # Odd spatial dims -> exercises the F.pad path and the ragged last grid block.
    H2, W2 = 7, 9
    x2 = jax.random.normal(k_x2, (B, H2 * W2 + det_n, C), dtype=jnp.float32)
    out2 = jax.block_until_ready(
        patch_merging_forward(x2, H2, W2, det_n, gamma, beta, w_red))
    ref2 = _reference(x2, H2, W2, det_n, gamma, beta, w_red)
    np.testing.assert_allclose(np.asarray(out2), np.asarray(ref2),
                               rtol=2e-2, atol=2e-2)
    assert out2.shape == (B, ((H2 + 1) // 2) * ((W2 + 1) // 2) + det_n, 2 * C)

    print("KERNEL_OK")
</pallas_src>

<mosaic_0001>
module attributes {stable_mosaic.version = 11 : i64} {
  func.func @_ln_project_kernel(%arg0: i32, %arg1: memref<64x128xf32, #tpu.memory_space<vmem>>, %arg2: memref<128x128xbf16, #tpu.memory_space<vmem>>, %arg3: memref<1x128xf32, #tpu.memory_space<vmem>>, %arg4: memref<64x128xf32, #tpu.memory_space<vmem>>) attributes {dimension_semantics = [#tpu.dimension_semantics<parallel>], iteration_bounds = array<i64: 2>, scalar_prefetch = 0 : i64, scratch_operands = 0 : i64, tpu.core_type = #tpu.core_type<tc>, window_params = [{transform_indices = @transform_0, window_bounds = array<i64: 64, 128>}, {pipeline_mode = #tpu.pipeline_mode<synchronous>, transform_indices = @transform_1, window_bounds = array<i64: 128, 128>}, {pipeline_mode = #tpu.pipeline_mode<synchronous>, transform_indices = @transform_2, window_bounds = array<i64: 1, 128>}, {transform_indices = @transform_3, window_bounds = array<i64: 64, 128>}]} {
    %c0 = arith.constant 0 : index
    %c0_0 = arith.constant 0 : index
    %0 = vector.load %arg1[%c0, %c0_0] : memref<64x128xf32, #tpu.memory_space<vmem>>, vector<64x128xf32>
    %cst = arith.constant dense<0.000000e+00> : vector<64xf32>
    %1 = vector.multi_reduction <add>, %0, %cst [1] : vector<64x128xf32> to vector<64xf32>
    %2 = vector.shape_cast %1 : vector<64xf32> to vector<64x1xf32>
    %3 = arith.mulf %0, %0 : vector<64x128xf32>
    %cst_1 = arith.constant dense<0.000000e+00> : vector<64xf32>
    %4 = vector.multi_reduction <add>, %3, %cst_1 [1] : vector<64x128xf32> to vector<64xf32>
    %5 = vector.shape_cast %4 : vector<64xf32> to vector<64x1xf32>
    %cst_2 = arith.constant 7.812500e-03 : f32
    %6 = vector.broadcast %cst_2 : f32 to vector<64x1xf32>
    %7 = arith.mulf %2, %6 : vector<64x1xf32>
    %cst_3 = arith.constant 7.812500e-03 : f32
    %8 = vector.broadcast %cst_3 : f32 to vector<64x1xf32>
    %9 = arith.mulf %5, %8 : vector<64x1xf32>
    %10 = arith.mulf %7, %7 : vector<64x1xf32>
    %11 = arith.subf %9, %10 : vector<64x1xf32>
    %12 = vector.broadcast %7 : vector<64x1xf32> to vector<64x128xf32>
    %13 = arith.subf %0, %12 : vector<64x128xf32>
    %cst_4 = arith.constant 9.99999974E-6 : f32
    %14 = vector.broadcast %cst_4 : f32 to vector<64x1xf32>
    %15 = arith.addf %11, %14 : vector<64x1xf32>
    %16 = math.rsqrt %15 : vector<64x1xf32>
    %17 = vector.broadcast %16 : vector<64x1xf32> to vector<64x128xf32>
    %18 = arith.mulf %13, %17 : vector<64x128xf32>
    %19 = arith.truncf %18 : vector<64x128xf32> to vector<64x128xbf16>
    %c0_5 = arith.constant 0 : index
    %c0_6 = arith.constant 0 : index
    %20 = vector.load %arg2[%c0_5, %c0_6] : memref<128x128xbf16, #tpu.memory_space<vmem>>, vector<128x128xbf16>
    %cst_7 = arith.constant dense<0.000000e+00> : vector<64x128xf32>
    %21 = tpu.matmul %19, %20, %cst_7 {dimension_numbers = #tpu.dot_dimension_numbers<[1], [0], [0], [1], [0, 0, 1, 1], [], []>} : vector<64x128xbf16>, vector<128x128xbf16>, vector<64x128xf32> -> vector<64x128xf32>
    %c0_8 = arith.constant 0 : index
    %c0_9 = arith.constant 0 : index
    %22 = vector.load %arg3[%c0_8, %c0_9] : memref<1x128xf32, #tpu.memory_space<vmem>>, vector<1x128xf32>
    %23 = vector.broadcast %22 : vector<1x128xf32> to vector<64x128xf32>
    %24 = arith.addf %21, %23 : vector<64x128xf32>
    %c0_10 = arith.constant 0 : index
    %c0_11 = arith.constant 0 : index
    %25 = vector.load %arg4[%c0_10, %c0_11] : memref<64x128xf32, #tpu.memory_space<vmem>>, vector<64x128xf32>
    tpu.vector_store %arg4[%c0_10, %c0_11], %24 {strides = array<i32>} : memref<64x128xf32, #tpu.memory_space<vmem>>, vector<64x128xf32>,
    return
  }
  func.func @transform_0(%arg0: i32) -> (i32, i32) {
    %c0_i32 = arith.constant 0 : i32
    %c0_i32_0 = arith.constant 0 : i32
    return %arg0, %c0_i32 : i32, i32
  }
  func.func @transform_1(%arg0: i32) -> (i32, i32) {
    %c0_i32 = arith.constant 0 : i32
    %c0_i32_0 = arith.constant 0 : i32
    %c0_i32_1 = arith.constant 0 : i32
    return %c0_i32, %c0_i32_0 : i32, i32
  }
  func.func @transform_2(%arg0: i32) -> (i32, i32) {
    %c0_i32 = arith.constant 0 : i32
    %c0_i32_0 = arith.constant 0 : i32
    %c0_i32_1 = arith.constant 0 : i32
    return %c0_i32, %c0_i32_0 : i32, i32
  }
  func.func @transform_3(%arg0: i32) -> (i32, i32) {
    %c0_i32 = arith.constant 0 : i32
    %c0_i32_0 = arith.constant 0 : i32
    return %arg0, %c0_i32 : i32, i32
  }
}

module attributes {stable_mosaic.version = 11 : i64} {
  func.func @_ln_project_kernel(%arg0: i32, %arg1: memref<64x128xf32, #tpu.memory_space<vmem>>, %arg2: memref<128x128xbf16, #tpu.memory_space<vmem>>, %arg3: memref<1x128xf32, #tpu.memory_space<vmem>>, %arg4: memref<64x128xf32, #tpu.memory_space<vmem>>) attributes {dimension_semantics = [#tpu.dimension_semantics<parallel>], iteration_bounds = array<i64: 2>, scalar_prefetch = 0 : i64, scratch_operands = 0 : i64, tpu.core_type = #tpu.core_type<tc>, window_params = [{transform_indices = @transform_0, window_bounds = array<i64: 64, 128>}, {pipeline_mode = #tpu.pipeline_mode<synchronous>, transform_indices = @transform_1, window_bounds = array<i64: 128, 128>}, {pipeline_mode = #tpu.pipeline_mode<synchronous>, transform_indices = @transform_2, window_bounds = array<i64: 1, 128>}, {transform_indices = @transform_3, window_bounds = array<i64: 64, 128>}]} {
    %c0 = arith.constant 0 : index
    %c0_0 = arith.constant 0 : index
    %0 = vector.load %arg1[%c0, %c0_0] : memref<64x128xf32, #tpu.memory_space<vmem>>, vector<64x128xf32>
    %cst = arith.constant dense<0.000000e+00> : vector<64xf32>
    %1 = vector.multi_reduction <add>, %0, %cst [1] : vector<64x128xf32> to vector<64xf32>
    %2 = vector.shape_cast %1 : vector<64xf32> to vector<64x1xf32>
    %3 = arith.mulf %0, %0 : vector<64x128xf32>
    %cst_1 = arith.constant dense<0.000000e+00> : vector<64xf32>
    %4 = vector.multi_reduction <add>, %3, %cst_1 [1] : vector<64x128xf32> to vector<64xf32>
    %5 = vector.shape_cast %4 : vector<64xf32> to vector<64x1xf32>
    %cst_2 = arith.constant 7.812500e-03 : f32
    %6 = vector.broadcast %cst_2 : f32 to vector<64x1xf32>
    %7 = arith.mulf %2, %6 : vector<64x1xf32>
    %cst_3 = arith.constant 7.812500e-03 : f32
    %8 = vector.broadcast %cst_3 : f32 to vector<64x1xf32>
    %9 = arith.mulf %5, %8 : vector<64x1xf32>
    %10 = arith.mulf %7, %7 : vector<64x1xf32>
    %11 = arith.subf %9, %10 : vector<64x1xf32>
    %12 = vector.broadcast %7 : vector<64x1xf32> to vector<64x128xf32>
    %13 = arith.subf %0, %12 : vector<64x128xf32>
    %cst_4 = arith.constant 9.99999974E-6 : f32
    %14 = vector.broadcast %cst_4 : f32 to vector<64x1xf32>
    %15 = arith.addf %11, %14 : vector<64x1xf32>
    %16 = math.rsqrt %15 : vector<64x1xf32>
    %17 = vector.broadcast %16 : vector<64x1xf32> to vector<64x128xf32>
    %18 = arith.mulf %13, %17 : vector<64x128xf32>
    %19 = arith.truncf %18 : vector<64x128xf32> to vector<64x128xbf16>
    %c0_5 = arith.constant 0 : index
    %c0_6 = arith.constant 0 : index
    %20 = vector.load %arg2[%c0_5, %c0_6] : memref<128x128xbf16, #tpu.memory_space<vmem>>, vector<128x128xbf16>
    %cst_7 = arith.constant dense<0.000000e+00> : vector<64x128xf32>
    %21 = tpu.matmul %19, %20, %cst_7 {dimension_numbers = #tpu.dot_dimension_numbers<[1], [0], [0], [1], [0, 0, 1, 1], [], []>} : vector<64x128xbf16>, vector<128x128xbf16>, vector<64x128xf32> -> vector<64x128xf32>
    %c0_8 = arith.constant 0 : index
    %c0_9 = arith.constant 0 : index
    %22 = vector.load %arg3[%c0_8, %c0_9] : memref<1x128xf32, #tpu.memory_space<vmem>>, vector<1x128xf32>
    %23 = vector.broadcast %22 : vector<1x128xf32> to vector<64x128xf32>
    %24 = arith.addf %21, %23 : vector<64x128xf32>
    %c0_10 = arith.constant 0 : index
    %c0_11 = arith.constant 0 : index
    %25 = vector.load %arg4[%c0_10, %c0_11] : memref<64x128xf32, #tpu.memory_space<vmem>>, vector<64x128xf32>
    tpu.vector_store %arg4[%c0_10, %c0_11], %24 {strides = array<i32>} : memref<64x128xf32, #tpu.memory_space<vmem>>, vector<64x128xf32>,
    return
  }
  func.func @transform_0(%arg0: i32) -> (i32, i32) {
    %c0_i32 = arith.constant 0 : i32
    %c0_i32_0 = arith.constant 0 : i32
    return %arg0, %c0_i32 : i32, i32
  }
  func.func @transform_1(%arg0: i32) -> (i32, i32) {
    %c0_i32 = arith.constant 0 : i32
    %c0_i32_0 = arith.constant 0 : i32
    %c0_i32_1 = arith.constant 0 : i32
    return %c0_i32, %c0_i32_0 : i32, i32
  }
  func.func @transform_2(%arg0: i32) -> (i32, i32) {
    %c0_i32 = arith.constant 0 : i32
    %c0_i32_0 = arith.constant 0 : i32
    %c0_i32_1 = arith.constant 0 : i32
    return %c0_i32, %c0_i32_0 : i32, i32
  }
  func.func @transform_3(%arg0: i32) -> (i32, i32) {
    %c0_i32 = arith.constant 0 : i32
    %c0_i32_0 = arith.constant 0 : i32
    return %arg0, %c0_i32 : i32, i32
  }
}

</mosaic_0001>

<llo_original>
// kernel: tpu_custom_call.1
$region0: #{tpu_custom_call.1}
  #allocation0 [shape = 'u32[]', space=smem, size = 0x4, offset = 0x4, fixed_abs, tag = 'smem constant byte address 0x4 - core index']
  #allocation1 [shape = 'u32[144,128]{1,0:T(1,128)}', space=vmem, size = 0x12000, scoped, tag = 'internal scratch']
  %s0 = inlined_call_operand.hbm [shape: f32[128,128], index: 0, kind: input, shape index: {}]
  %s1 = inlined_call_operand.hbm [shape: bf16[128,128], index: 1, kind: input, shape index: {}]
  %s2 = inlined_call_operand.vmem [shape: f32[1,128], index: 2, kind: input, shape index: {}]
  %s3 = inlined_call_operand.hbm [shape: f32[128,128], index: 3, kind: output, shape index: {}]
  %s4 = sld [smem:[#allocation0]]
  $region53: #{tpu_custom_call.1} parent=0
    _
  %s6 = ssub.s32 1, %s4
  %s7 = scalar_select 0, %s6, %s4
  $region1: #{tpu_custom_call.1} parent=0
    #allocation2 [shape = 'u8[65536]{0}', space=vmem, size = 0x10000, scoped, tag = 'input window, operand 0']
    #allocation3 [shape = 's32[2]{0}', space=sflag, size = 0x8, scoped, tag = 'scoped memory for tpu_custom_call.1']
    #allocation4 [shape = 's32[2]{0}', space=sflag, size = 0x8, scoped, tag = 'scoped memory for tpu_custom_call.1']
    #allocation5 [shape = 'u8[32768]{0}', space=vmem, size = 0x8000, scoped, tag = 'input window, operand 1, single buffered']
    #allocation6 [shape = 's32[1]{0}', space=sflag, size = 0x4, scoped, tag = 'scoped memory for tpu_custom_call.1']
    #allocation7 [shape = 'u8[65536]{0}', space=vmem, size = 0x10000, scoped, tag = 'output window, operand 0']
    %8 = vsyncpa [#allocation3], 0
    %s9 = scalar_lea.sflag [#allocation3], 1
    %10 = vsyncpa %s9, 0
    %11 = vsyncpa [#allocation6], 0
    %12 = vsyncpa [#allocation4], 0
    %s13 = scalar_lea.sflag [#allocation4], 1
    %14 = vsyncpa %s13, 0
    loop: start=0, step=1, limit=4
    $region2: #{tpu_custom_call.1} parent=1 // loop_pre_header
      _
    $region3: #{tpu_custom_call.1} parent=1 // loop_header
      %s16 = sphi 0, %s20
      %p17 = scmp.ge.s32.totalorder %s16, 4
      %s26 = sphi 0, %s28
      %s29 = sphi 0, %s26
      %s30 = sphi 0, %s29
      %s46 = sphi 0, %s30
      %s50 = sphi 0, %s50
      %s52 = sphi 0, %s50
      %s53 = sphi 0, %s52
      %s67 = sphi 0, %s53
      %s71 = sphi 0, %s71
      %s73 = sphi 0, %s71
      %s74 = sphi 0, %s73
      %s88 = sphi 0, %s74
      %s94 = sphi 0, %s96
      %s97 = sphi 0, %s94
      %s98 = sphi 0, %s97
      %s114 = sphi 0, %s98
    $region4: #{tpu_custom_call.1} parent=1 // loop_header_branch
      %19 = sbr.rel (%p17) target = $region8
    $region5: #{tpu_custom_call.1} parent=1 // loop_body
      %s21 = ssub.s32 %s16, 1
      %s22 = ssub.s32 %s16, 2
      %s23 = sadd.s32 %s16, 1
      %s24 = ssub.s32 %s16, %s23
      %p25 = scmp.eq.s32.totalorder %s24, 0
      %s27 = sadd.s32 %s26, 1
      %s28 = scalar_select %p25, %s26, %s27
      %p31 = pneg %p25
      %p32 = scmp.eq.s32.totalorder %s16, 1
      %p33 = por %p31, %p32
      %p34 = scmp.ne.s32.totalorder %s26, %s29
      %p35 = scmp.eq.s32.totalorder %s16, 0
      %p36 = por %p34, %p35
      %p37 = scmp.ne.s32.totalorder %s26, %s29
      %p38 = scmp.eq.s32.totalorder %s21, 1
      %p39 = por %p37, %p38
      %p40 = scmp.ne.s32.totalorder %s29, %s30
      %p41 = scmp.eq.s32.totalorder %s21, 0
      %p42 = por %p40, %p41
      %p43 = scmp.ne.s32.totalorder %s29, %s30
      %p44 = scmp.eq.s32.totalorder %s22, 1
      %p45 = por %p43, %p44
      %p47 = scmp.ne.s32.totalorder %s30, %s46
      %p48 = scmp.eq.s32.totalorder %s22, 0
      %p49 = por %p47, %p48
      %s51 = sadd.s32 %s50, 1
      %p54 = scmp.eq.s32.totalorder %s16, 1
      %p55 = scmp.ne.s32.totalorder %s50, %s52
      %p56 = scmp.eq.s32.totalorder %s16, 0
      %p57 = por %p55, %p56
      %p58 = scmp.ne.s32.totalorder %s50, %s52
      %p59 = scmp.eq.s32.totalorder %s21, 1
      %p60 = por %p58, %p59
      %p61 = scmp.ne.s32.totalorder %s52, %s53
      %p62 = scmp.eq.s32.totalorder %s21, 0
      %p63 = por %p61, %p62
      %p64 = scmp.ne.s32.totalorder %s52, %s53
      %p65 = scmp.eq.s32.totalorder %s22, 1
      %p66 = por %p64, %p65
      %p68 = scmp.ne.s32.totalorder %s53, %s67
      %p69 = scmp.eq.s32.totalorder %s22, 0
      %p70 = por %p68, %p69
      %s72 = sadd.s32 %s71, 1
      %p75 = scmp.eq.s32.totalorder %s16, 1
      %p76 = scmp.ne.s32.totalorder %s71, %s73
      %p77 = scmp.eq.s32.totalorder %s16, 0
      %p78 = por %p76, %p77
      %p79 = scmp.ne.s32.totalorder %s71, %s73
      %p80 = scmp.eq.s32.totalorder %s21, 1
      %p81 = por %p79, %p80
      %p82 = scmp.ne.s32.totalorder %s73, %s74
      %p83 = scmp.eq.s32.totalorder %s21, 0
      %p84 = por %p82, %p83
      %p85 = scmp.ne.s32.totalorder %s73, %s74
      %p86 = scmp.eq.s32.totalorder %s22, 1
      %p87 = por %p85, %p86
      %p89 = scmp.ne.s32.totalorder %s74, %s88
      %p90 = scmp.eq.s32.totalorder %s22, 0
      %p91 = por %p89, %p90
      %s92 = ssub.s32 %s16, %s23
      %p93 = scmp.eq.s32.totalorder %s92, 0
      %s95 = sadd.s32 %s94, 1
      %s96 = scalar_select %p93, %s94, %s95
      %p99 = pneg %p93
      %p100 = scmp.eq.s32.totalorder %s16, 1
      %p101 = por %p99, %p100
      %p102 = scmp.ne.s32.totalorder %s94, %s97
      %p103 = scmp.eq.s32.totalorder %s16, 0
      %p104 = por %p102, %p103
      %p105 = scmp.ne.s32.totalorder %s94, %s97
      %p106 = scmp.eq.s32.totalorder %s21, 1
      %p107 = por %p105, %p106
      %p108 = scmp.ne.s32.totalorder %s97, %s98
      %p109 = scmp.eq.s32.totalorder %s21, 0
      %p110 = por %p108, %p109
      %p111 = scmp.ne.s32.totalorder %s97, %s98
      %p112 = scmp.eq.s32.totalorder %s22, 1
      %p113 = por %p111, %p112
      %p115 = scmp.ne.s32.totalorder %s98, %s114
      %p116 = scmp.eq.s32.totalorder %s22, 0
      %p117 = por %p115, %p116
      %p118 = scmp.le.s32.totalorder 1, %s16
      %p119 = scmp.lt.s32.totalorder %s16, 3
      %p120 = pnand %p118, %p119
      %p121 = pneg %p120
      // Predicated region
      $region9: #{tpu_custom_call.1} parent=5 // pred_check
        _
      $region10: #{tpu_custom_call.1} parent=5 // pred_check_branch
        %123 = sbr.rel (%p120) target = $region12
      $region11: #{tpu_custom_call.1} parent=5 // pred_region
        %s124 = ssub.s32 %s16, 1
        // Predicated region
        $region13: #{tpu_custom_call.1} parent=11 // pred_check
          %p125 = pneg %p63
        $region14: #{tpu_custom_call.1} parent=11 // pred_check_branch
          %127 = sbr.rel (%p125) target = $region16
        $region15: #{tpu_custom_call.1} parent=11 // pred_region
          %s129 = ssub.s32 1024, 1024
          %130 = vsyncadd [#allocation6], %s129
          %s131 = sshll.u32 [#allocation5], 4
          %s132 = int_to_ptr.vmem [resolvable:$true] %s131
          %137 = dma.hbm_to_vmem [thread:$0]  %s1, 1024, %s132, [#allocation6], 64, 64, 4
        $region16: #{tpu_custom_call.1} parent=11 // pred_fallthru
          _
        // Predicated region
        $region17: #{tpu_custom_call.1} parent=11 // pred_check
          %p138 = pneg %p84
        $region18: #{tpu_custom_call.1} parent=11 // pred_check_branch
          %140 = sbr.rel (%p138) target = $region20
        $region19: #{tpu_custom_call.1} parent=11 // pred_region
          _
        $region20: #{tpu_custom_call.1} parent=11 // pred_fallthru
          _
      $region12: #{tpu_custom_call.1} parent=5 // pred_fallthru
        _
      %p141 = scmp.lt.s32.totalorder %s16, 2
      // Predicated region
      $region21: #{tpu_custom_call.1} parent=5 // pred_check
        %p142 = pneg %p141
      $region22: #{tpu_custom_call.1} parent=5 // pred_check_branch
        %144 = sbr.rel (%p142) target = $region24
      $region23: #{tpu_custom_call.1} parent=5 // pred_region
        // Predicated region
        $region25: #{tpu_custom_call.1} parent=23 // pred_check
          %p145 = pneg %p36
        $region26: #{tpu_custom_call.1} parent=23 // pred_check_branch
          %147 = sbr.rel (%p145) target = $region28
        $region27: #{tpu_custom_call.1} parent=23 // pred_region
          %s148 = sand.u32 %s26, 1
          %s149 = scalar_lea.sflag [#allocation3], %s148
          %s150 = sand.u32 %s26, 1
          %s151 = smul.addr %s150, 64
          %s152 = scalar_lea.vmem [#allocation2], %s151
          %s153 = smul.u32 8, %s16
          %s155 = ssub.s32 1024, 1024
          %156 = vsyncadd %s149, %s155
          %s157 = smul.addr %s153, 128
          %s158 = scalar_lea.hbm %s0, %s157
          %s159 = sshll.u32 %s152, 4
          %s160 = int_to_ptr.vmem [resolvable:$true] %s159
          %165 = dma.hbm_to_vmem [thread:$0]  %s158, 1024, %s160, %s149, 128, 128, 8
        $region28: #{tpu_custom_call.1} parent=23 // pred_fallthru
          _
      $region24: #{tpu_custom_call.1} parent=5 // pred_fallthru
        _
      %p166 = scmp.le.s32.totalorder 1, %s16
      %p167 = scmp.lt.s32.totalorder %s16, 3
      %p168 = pnand %p166, %p167
      %p169 = pneg %p168
      // Predicated region
      $region29: #{tpu_custom_call.1} parent=5 // pred_check
        _
      $region30: #{tpu_custom_call.1} parent=5 // pred_check_branch
        %171 = sbr.rel (%p168) target = $region32
      $region31: #{tpu_custom_call.1} parent=5 // pred_region
        %s172 = ssub.s32 %s16, 1
        %s173 = sand.u32 %s29, 1
        %s174 = scalar_lea.sflag [#allocation3], %s173
        %s175 = sand.u32 %s29, 1
        %s176 = smul.addr %s175, 64
        %s177 = scalar_lea.vmem [#allocation2], %s176
        // Predicated region
        $region33: #{tpu_custom_call.1} parent=31 // pred_check
          %p178 = pneg %p42
        $region34: #{tpu_custom_call.1} parent=31 // pred_check_branch
          %180 = sbr.rel (%p178) target = $region36
        $region35: #{tpu_custom_call.1} parent=31 // pred_region
          %181 = dma.done %s174, 1024
        $region36: #{tpu_custom_call.1} parent=31 // pred_fallthru
          _
        // Predicated region
        $region37: #{tpu_custom_call.1} parent=31 // pred_check
          %p182 = pneg %p63
        $region38: #{tpu_custom_call.1} parent=31 // pred_check_branch
          %184 = sbr.rel (%p182) target = $region40
        $region39: #{tpu_custom_call.1} parent=31 // pred_region
          %185 = dma.done [#allocation6], 1024
        $region40: #{tpu_custom_call.1} parent=31 // pred_fallthru
          _
        %s186 = sand.u32 %s29, 1
        %s187 = scalar_lea.sflag [#allocation3], %s186
        %s188 = sand.u32 %s29, 1
        %s189 = smul.addr %s188, 64
        %s190 = scalar_lea.vmem [#allocation2], %s189
        %p191 = pneg %p42
        %p192 = pneg %p39
        %p193 = pneg %p63
        %p194 = pneg %p60
        %p195 = pneg %p84
        %p196 = pneg %p81
        %p197 = pneg %p110
        %p198 = pneg %p107
        %s199 = sand.u32 %s97, 1
        %s200 = scalar_lea.sflag [#allocation4], %s199
        %s201 = sand.u32 %s97, 1
        %s202 = smul.addr %s201, 64
        %s203 = scalar_lea.vmem [#allocation7], %s202
        %s204 = smul.u32 8, %s21
        %s205 = smul.u32 8, %s21
        %v207 = vld [vmem:[%s177] sm:$0xff]
        %v208 = vld [vmem:[%s177 + $0x8] sm:$0xff]
        %v209 = vld [vmem:[%s177 + $0x10] sm:$0xff]
        %v210 = vld [vmem:[%s177 + $0x18] sm:$0xff]
        %v211 = vld [vmem:[%s177 + $0x20] sm:$0xff]
        %v212 = vld [vmem:[%s177 + $0x28] sm:$0xff]
        %v213 = vld [vmem:[%s177 + $0x30] sm:$0xff]
        %v214 = vld [vmem:[%s177 + $0x38] sm:$0xff]
        %215 = vadd.xlane.f32.xlu0 %v207
        %v216 = vpop.xlane.xlu0 %215
        %217 = vadd.xlane.f32.xlu0 %v208
        %v218 = vpop.xlane.xlu0 %217
        %219 = vadd.xlane.f32.xlu0 %v209
        %v220 = vpop.xlane.xlu0 %219
        %221 = vadd.xlane.f32.xlu0 %v210
        %v222 = vpop.xlane.xlu0 %221
        %223 = vadd.xlane.f32.xlu0 %v211
        %v224 = vpop.xlane.xlu0 %223
        %225 = vadd.xlane.f32.xlu0 %v212
        %v226 = vpop.xlane.xlu0 %225
        %227 = vadd.xlane.f32.xlu0 %v213
        %v228 = vpop.xlane.xlu0 %227
        %229 = vadd.xlane.f32.xlu0 %v214
        %v230 = vpop.xlane.xlu0 %229
        %v231 = vmul.f32 %v207, %v207
        %v232 = vmul.f32 %v208, %v208
        %v233 = vmul.f32 %v209, %v209
        %v234 = vmul.f32 %v210, %v210
        %v235 = vmul.f32 %v211, %v211
        %v236 = vmul.f32 %v212, %v212
        %v237 = vmul.f32 %v213, %v213
        %v238 = vmul.f32 %v214, %v214
        %239 = vadd.xlane.f32.xlu0 %v231
        %v240 = vpop.xlane.xlu0 %239
        %241 = vadd.xlane.f32.xlu0 %v232
        %v242 = vpop.xlane.xlu0 %241
        %243 = vadd.xlane.f32.xlu0 %v233
        %v244 = vpop.xlane.xlu0 %243
        %245 = vadd.xlane.f32.xlu0 %v234
        %v246 = vpop.xlane.xlu0 %245
        %247 = vadd.xlane.f32.xlu0 %v235
        %v248 = vpop.xlane.xlu0 %247
        %249 = vadd.xlane.f32.xlu0 %v236
        %v250 = vpop.xlane.xlu0 %249
        %251 = vadd.xlane.f32.xlu0 %v237
        %v252 = vpop.xlane.xlu0 %251
        %253 = vadd.xlane.f32.xlu0 %v238
        %v254 = vpop.xlane.xlu0 %253
        %v255 = vmul.f32 %v216, 0.0078125
        %v256 = vmul.f32 %v218, 0.0078125
        %v257 = vmul.f32 %v220, 0.0078125
        %v258 = vmul.f32 %v222, 0.0078125
        %v259 = vmul.f32 %v224, 0.0078125
        %v260 = vmul.f32 %v226, 0.0078125
        %v261 = vmul.f32 %v228, 0.0078125
        %v262 = vmul.f32 %v230, 0.0078125
        %v263 = vmul.f32 %v240, 0.0078125
        %v264 = vmul.f32 %v242, 0.0078125
        %v265 = vmul.f32 %v244, 0.0078125
        %v266 = vmul.f32 %v246, 0.0078125
        %v267 = vmul.f32 %v248, 0.0078125
        %v268 = vmul.f32 %v250, 0.0078125
        %v269 = vmul.f32 %v252, 0.0078125
        %v270 = vmul.f32 %v254, 0.0078125
        %v271 = vmul.f32 %v255, %v255
        %v272 = vmul.f32 %v256, %v256
        %v273 = vmul.f32 %v257, %v257
        %v274 = vmul.f32 %v258, %v258
        %v275 = vmul.f32 %v259, %v259
        %v276 = vmul.f32 %v260, %v260
        %v277 = vmul.f32 %v261, %v261
        %v278 = vmul.f32 %v262, %v262
        %v279 = vsub.f32 %v263, %v271
        %v280 = vsub.f32 %v264, %v272
        %v281 = vsub.f32 %v265, %v273
        %v282 = vsub.f32 %v266, %v274
        %v283 = vsub.f32 %v267, %v275
        %v284 = vsub.f32 %v268, %v276
        %v285 = vsub.f32 %v269, %v277
        %v286 = vsub.f32 %v270, %v278
        %v287 = vsub.f32 %v207, %v255
        %v288 = vsub.f32 %v208, %v256
        %v289 = vsub.f32 %v209, %v257
        %v290 = vsub.f32 %v210, %v258
        %v291 = vsub.f32 %v211, %v259
        %v292 = vsub.f32 %v212, %v260
        %v293 = vsub.f32 %v213, %v261
        %v294 = vsub.f32 %v214, %v262
        %v295 = vadd.f32 %v279, 1e-05
        %v296 = vadd.f32 %v280, 1e-05
        %v297 = vadd.f32 %v281, 1e-05
        %v298 = vadd.f32 %v282, 1e-05
        %v299 = vadd.f32 %v283, 1e-05
        %v300 = vadd.f32 %v284, 1e-05
        %v301 = vadd.f32 %v285, 1e-05
        %v302 = vadd.f32 %v286, 1e-05
        %v303 = vrsqrt.pop %v295
        %v304 = vrsqrt.pop %v296
        %v305 = vrsqrt.pop %v297
        %v306 = vrsqrt.pop %v298
        %v307 = vrsqrt.pop %v299
        %v308 = vrsqrt.pop %v300
        %v309 = vrsqrt.pop %v301
        %v310 = vrsqrt.pop %v302
        %v311 = vmul.f32 %v287, %v303
        %v312 = vmul.f32 %v288, %v304
        %v313 = vmul.f32 %v289, %v305
        %v314 = vmul.f32 %v290, %v306
        %v315 = vmul.f32 %v291, %v307
        %v316 = vmul.f32 %v292, %v308
        %v317 = vmul.f32 %v293, %v309
        %v318 = vmul.f32 %v294, %v310
        %v319 = vpack.c.bf16 %v312, %v311
        %v320 = vpack.c.bf16 %v314, %v313
        %v321 = vpack.c.bf16 %v316, %v315
        %v322 = vpack.c.bf16 %v318, %v317
        %v323 = vld [vmem:[#allocation5] sm:$0xf]
        %v324 = vld [vmem:[#allocation5 + $0x4] sm:$0xf]
        %v325 = vld [vmem:[#allocation5 + $0x8] sm:$0xf]
        %v326 = vld [vmem:[#allocation5 + $0xc] sm:$0xf]
        %v327 = vld [vmem:[#allocation5 + $0x10] sm:$0xf]
        %v328 = vld [vmem:[#allocation5 + $0x14] sm:$0xf]
        %v329 = vld [vmem:[#allocation5 + $0x18] sm:$0xf]
        %v330 = vld [vmem:[#allocation5 + $0x1c] sm:$0xf]
        %v331 = vld [vmem:[#allocation5 + $0x20] sm:$0xf]
        %v332 = vld [vmem:[#allocation5 + $0x24] sm:$0xf]
        %v333 = vld [vmem:[#allocation5 + $0x28] sm:$0xf]
        %v334 = vld [vmem:[#allocation5 + $0x2c] sm:$0xf]
        %v335 = vld [vmem:[#allocation5 + $0x30] sm:$0xf]
        %v336 = vld [vmem:[#allocation5 + $0x34] sm:$0xf]
        %v337 = vld [vmem:[#allocation5 + $0x38] sm:$0xf]
        %v338 = vld [vmem:[#allocation5 + $0x3c] sm:$0xf]
        %v339 = vld [vmem:[%s2] sm:$0x1]
        %v341 = vlaneseq
        %v342 = vshrl.u32 %v341, 7
        %v343 = vsub.s32 0, %v342
        %v344 = vrot.slane %v339, %v343
        %v362 = vunpack.c.l.b16 %v323
        %v363 = vunpack.c.l.b16 %v324
        %v364 = vunpack.c.l.b16 %v325
        %v365 = vunpack.c.l.b16 %v326
        %v366 = vunpack.c.l.b16 %v327
        %v367 = vunpack.c.l.b16 %v328
        %v368 = vunpack.c.l.b16 %v329
        %v369 = vunpack.c.l.b16 %v330
        %v370 = vunpack.c.l.b16 %v331
        %v371 = vunpack.c.l.b16 %v332
        %v372 = vunpack.c.l.b16 %v333
        %v373 = vunpack.c.l.b16 %v334
        %v374 = vunpack.c.l.b16 %v335
        %v375 = vunpack.c.l.b16 %v336
        %v376 = vunpack.c.l.b16 %v337
        %v377 = vunpack.c.l.b16 %v338
        %v378 = vpack.c.b16 %v363, %v362
        %v379 = vpack.c.b16 %v365, %v364
        %v380 = vpack.c.b16 %v367, %v366
        %v381 = vpack.c.b16 %v369, %v368
        %v382 = vpack.c.b16 %v371, %v370
        %v383 = vpack.c.b16 %v373, %v372
        %v384 = vpack.c.b16 %v375, %v374
        %v385 = vpack.c.b16 %v377, %v376
        %394 = vmatprep.subr.bf16.mxu0 0
        %395 = vmatpush1.bf16.msra.mxu0 %v378
        %396 = vmatprep.subr.bf16.mxu0 0
        %397 = vmatpush1.bf16.msra.mxu0 %v379
        %398 = vmatprep.subr.bf16.mxu0 0
        %399 = vmatpush1.bf16.msra.mxu0 %v380
        %400 = vmatprep.subr.bf16.mxu0 0
        %401 = vmatpush1.bf16.msra.mxu0 %v381
        %402 = vmatprep.subr.bf16.mxu0 0
        %403 = vmatpush1.bf16.msra.mxu0 %v382
        %404 = vmatprep.subr.bf16.mxu0 0
        %405 = vmatpush1.bf16.msra.mxu0 %v383
        %406 = vmatprep.subr.bf16.mxu0 0
        %407 = vmatpush1.bf16.msra.mxu0 %v384
        %408 = vmatprep.subr.bf16.mxu0 0
        %409 = vmatpush1.bf16.msra.mxu0 %v385
        %410 = vmatprep.subr.bf16.mxu0 0
        %411 = vmatpush1.bf16.msra.mxu0 0
        %412 = vmatprep.subr.bf16.mxu0 0
        %413 = vmatpush1.bf16.msra.mxu0 0
        %414 = vmatprep.subr.bf16.mxu0 0
        %415 = vmatpush1.bf16.msra.mxu0 0
        %416 = vmatprep.subr.bf16.mxu0 0
        %417 = vmatpush1.bf16.msra.mxu0 0
        %418 = vmatprep.subr.bf16.mxu0 0
        %419 = vmatpush1.bf16.msra.mxu0 0
        %420 = vmatprep.subr.bf16.mxu0 0
        %421 = vmatpush1.bf16.msra.mxu0 0
        %422 = vmatprep.subr.bf16.mxu0 0
        %423 = vmatpush1.bf16.msra.mxu0 0
        %424 = vmatprep.subr.bf16.mxu0 0
        %425 = vmatpush1.bf16.msra.mxu0 0
        %426 = vmatprep.mubr.bf16.mxu0 0
        %427 = vmatmul.mubr.bf16.gmra.mrb[0].mxu0 %v319
        %v428 = vpop.f32.mrb[0].mxu0
        %v429 = vadd.f32 %v344, %v428
        %v430 = vpop.f32.mrb[0].mxu0
        %v431 = vpop.f32.mrb[0].mxu0
        %v432 = vadd.f32 %v344, %v431
        %v433 = vpop.f32.mrb[0].mxu0
        %434 = vmatprep.mubr.bf16.mxu0 0
        %435 = vmatmul.mubr.bf16.gmra.mrb[0].mxu0 %v320
        %v436 = vpop.f32.mrb[0].mxu0
        %v437 = vadd.f32 %v344, %v436
        %v438 = vpop.f32.mrb[0].mxu0
        %v439 = vpop.f32.mrb[0].mxu0
        %v440 = vadd.f32 %v344, %v439
        %v441 = vpop.f32.mrb[0].mxu0
        %442 = vmatprep.mubr.bf16.mxu0 0
        %443 = vmatmul.mubr.bf16.gmra.mrb[0].mxu0 %v321
        %v444 = vpop.f32.mrb[0].mxu0
        %v445 = vadd.f32 %v344, %v444
        %v446 = vpop.f32.mrb[0].mxu0
        %v447 = vpop.f32.mrb[0].mxu0
        %v448 = vadd.f32 %v344, %v447
        %v449 = vpop.f32.mrb[0].mxu0
        %450 = vmatprep.mubr.bf16.mxu0 0
        %451 = vmatmul.mubr.bf16.gmra.mrb[0].mxu0 %v322
        %v452 = vpop.f32.mrb[0].mxu0
        %v453 = vadd.f32 %v344, %v452
        %v454 = vpop.f32.mrb[0].mxu0
        %v455 = vpop.f32.mrb[0].mxu0
        %v456 = vadd.f32 %v344, %v455
        %v457 = vpop.f32.mrb[0].mxu0
        %458 = vdwg.mxu0
        %459 = vst [vmem:[%s203] sm:$0xff] %v429
        %460 = vst [vmem:[%s203 + $0x8] sm:$0xff] %v432
        %461 = vst [vmem:[%s203 + $0x10] sm:$0xff] %v437
        %462 = vst [vmem:[%s203 + $0x18] sm:$0xff] %v440
        %463 = vst [vmem:[%s203 + $0x20] sm:$0xff] %v445
        %464 = vst [vmem:[%s203 + $0x28] sm:$0xff] %v448
        %465 = vst [vmem:[%s203 + $0x30] sm:$0xff] %v453
        %466 = vst [vmem:[%s203 + $0x38] sm:$0xff] %v456
        %s467 = sand.u32 %s97, 1
        %s468 = scalar_lea.sflag [#allocation4], %s467
        %s469 = sand.u32 %s97, 1
        %s470 = smul.addr %s469, 64
        %s471 = scalar_lea.vmem [#allocation7], %s470
        // Predicated region
        $region41: #{tpu_custom_call.1} parent=31 // pred_check
          %p472 = pneg %p107
        $region42: #{tpu_custom_call.1} parent=31 // pred_check_branch
          %474 = sbr.rel (%p472) target = $region44
        $region43: #{tpu_custom_call.1} parent=31 // pred_region
          %s475 = smul.u32 8, %s21
          %s477 = ssub.s32 1024, 1024
          %478 = vsyncadd %s468, %s477
          %s479 = smul.addr %s475, 128
          %s480 = scalar_lea.hbm %s3, %s479
          %s481 = sshll.u32 %s471, 4
          %s482 = int_to_ptr.vmem [resolvable:$true] %s481
          %487 = dma.vmem_to_hbm [thread:$0]  %s482, 1024, %s480, %s468, 128, 128, 8
        $region44: #{tpu_custom_call.1} parent=31 // pred_fallthru
          _
      $region32: #{tpu_custom_call.1} parent=5 // pred_fallthru
        _
      %p488 = scmp.le.s32.totalorder 2, %s16
      // Predicated region
      $region45: #{tpu_custom_call.1} parent=5 // pred_check
        %p489 = pneg %p488
      $region46: #{tpu_custom_call.1} parent=5 // pred_check_branch
        %491 = sbr.rel (%p489) target = $region48
      $region47: #{tpu_custom_call.1} parent=5 // pred_region
        %s492 = ssub.s32 %s16, 2
        // Predicated region
        $region49: #{tpu_custom_call.1} parent=47 // pred_check
          %p493 = pneg %p113
        $region50: #{tpu_custom_call.1} parent=47 // pred_check_branch
          %495 = sbr.rel (%p493) target = $region52
        $region51: #{tpu_custom_call.1} parent=47 // pred_region
          %s496 = sand.u32 %s98, 1
          %s497 = scalar_lea.sflag [#allocation4], %s496
          %s498 = sand.u32 %s98, 1
          %s499 = smul.addr %s498, 64
          %s500 = scalar_lea.vmem [#allocation7], %s499
          %501 = dma.done %s497, 1024
        $region52: #{tpu_custom_call.1} parent=47 // pred_fallthru
          _
      $region48: #{tpu_custom_call.1} parent=5 // pred_fallthru
        _
    $region6: #{tpu_custom_call.1} parent=1 // loop_footer
      %s20 = sadd.s32 1, %s16
    $region7: #{tpu_custom_call.1} parent=1 // loop_footer_branch
      %15 = sbr.rel target = $region3
    $region8: #{tpu_custom_call.1} parent=1 // loop_exit
      _
    %502 = vsyncpa [#allocation3], 1
    %s503 = scalar_lea.sflag [#allocation3], 1
    %504 = vsyncpa %s503, 1
    %505 = vsyncpa [#allocation6], 1
    %506 = vsyncpa [#allocation4], 1
    %s507 = scalar_lea.sflag [#allocation4], 1
    %508 = vsyncpa %s507, 1

// kernel: tpu_custom_call.1
$region0: #{tpu_custom_call.1}
  #allocation0 [shape = 'u32[]', space=smem, size = 0x4, offset = 0x4, fixed_abs, tag = 'smem constant byte address 0x4 - core index']
  #allocation1 [shape = 'u32[144,128]{1,0:T(1,128)}', space=vmem, size = 0x12000, scoped, tag = 'internal scratch']
  %s0 = inlined_call_operand.hbm [shape: f32[128,128], index: 0, kind: input, shape index: {}]
  %s1 = inlined_call_operand.hbm [shape: bf16[128,128], index: 1, kind: input, shape index: {}]
  %s2 = inlined_call_operand.vmem [shape: f32[1,128], index: 2, kind: input, shape index: {}]
  %s3 = inlined_call_operand.hbm [shape: f32[128,128], index: 3, kind: output, shape index: {}]
  %s4 = sld [smem:[#allocation0]]
  $region53: #{tpu_custom_call.1} parent=0
    _
  %s6 = ssub.s32 1, %s4
  %s7 = scalar_select 0, %s6, %s4
  $region1: #{tpu_custom_call.1} parent=0
    #allocation2 [shape = 'u8[65536]{0}', space=vmem, size = 0x10000, scoped, tag = 'input window, operand 0']
    #allocation3 [shape = 's32[2]{0}', space=sflag, size = 0x8, scoped, tag = 'scoped memory for tpu_custom_call.1']
    #allocation4 [shape = 's32[2]{0}', space=sflag, size = 0x8, scoped, tag = 'scoped memory for tpu_custom_call.1']
    #allocation5 [shape = 'u8[32768]{0}', space=vmem, size = 0x8000, scoped, tag = 'input window, operand 1, single buffered']
    #allocation6 [shape = 's32[1]{0}', space=sflag, size = 0x4, scoped, tag = 'scoped memory for tpu_custom_call.1']
    #allocation7 [shape = 'u8[65536]{0}', space=vmem, size = 0x10000, scoped, tag = 'output window, operand 0']
    %8 = vsyncpa [#allocation3], 0
    %s9 = scalar_lea.sflag [#allocation3], 1
    %10 = vsyncpa %s9, 0
    %11 = vsyncpa [#allocation6], 0
    %12 = vsyncpa [#allocation4], 0
    %s13 = scalar_lea.sflag [#allocation4], 1
    %14 = vsyncpa %s13, 0
    loop: start=0, step=1, limit=4
    $region2: #{tpu_custom_call.1} parent=1 // loop_pre_header
      _
    $region3: #{tpu_custom_call.1} parent=1 // loop_header
      %s16 = sphi 0, %s20
      %p17 = scmp.ge.s32.totalorder %s16, 4
      %s26 = sphi 0, %s28
      %s29 = sphi 0, %s26
      %s30 = sphi 0, %s29
      %s46 = sphi 0, %s30
      %s50 = sphi 0, %s50
      %s52 = sphi 0, %s50
      %s53 = sphi 0, %s52
      %s67 = sphi 0, %s53
      %s71 = sphi 0, %s71
      %s73 = sphi 0, %s71
      %s74 = sphi 0, %s73
      %s88 = sphi 0, %s74
      %s94 = sphi 0, %s96
      %s97 = sphi 0, %s94
      %s98 = sphi 0, %s97
      %s114 = sphi 0, %s98
    $region4: #{tpu_custom_call.1} parent=1 // loop_header_branch
      %19 = sbr.rel (%p17) target = $region8
    $region5: #{tpu_custom_call.1} parent=1 // loop_body
      %s21 = ssub.s32 %s16, 1
      %s22 = ssub.s32 %s16, 2
      %s23 = sadd.s32 %s16, 1
      %s24 = ssub.s32 %s16, %s23
      %p25 = scmp.eq.s32.totalorder %s24, 0
      %s27 = sadd.s32 %s26, 1
      %s28 = scalar_select %p25, %s26, %s27
      %p31 = pneg %p25
      %p32 = scmp.eq.s32.totalorder %s16, 1
      %p33 = por %p31, %p32
      %p34 = scmp.ne.s32.totalorder %s26, %s29
      %p35 = scmp.eq.s32.totalorder %s16, 0
      %p36 = por %p34, %p35
      %p37 = scmp.ne.s32.totalorder %s26, %s29
      %p38 = scmp.eq.s32.totalorder %s21, 1
      %p39 = por %p37, %p38
      %p40 = scmp.ne.s32.totalorder %s29, %s30
      %p41 = scmp.eq.s32.totalorder %s21, 0
      %p42 = por %p40, %p41
      %p43 = scmp.ne.s32.totalorder %s29, %s30
      %p44 = scmp.eq.s32.totalorder %s22, 1
      %p45 = por %p43, %p44
      %p47 = scmp.ne.s32.totalorder %s30, %s46
      %p48 = scmp.eq.s32.totalorder %s22, 0
      %p49 = por %p47, %p48
      %s51 = sadd.s32 %s50, 1
      %p54 = scmp.eq.s32.totalorder %s16, 1
      %p55 = scmp.ne.s32.totalorder %s50, %s52
      %p56 = scmp.eq.s32.totalorder %s16, 0
      %p57 = por %p55, %p56
      %p58 = scmp.ne.s32.totalorder %s50, %s52
      %p59 = scmp.eq.s32.totalorder %s21, 1
      %p60 = por %p58, %p59
      %p61 = scmp.ne.s32.totalorder %s52, %s53
      %p62 = scmp.eq.s32.totalorder %s21, 0
      %p63 = por %p61, %p62
      %p64 = scmp.ne.s32.totalorder %s52, %s53
      %p65 = scmp.eq.s32.totalorder %s22, 1
      %p66 = por %p64, %p65
      %p68 = scmp.ne.s32.totalorder %s53, %s67
      %p69 = scmp.eq.s32.totalorder %s22, 0
      %p70 = por %p68, %p69
      %s72 = sadd.s32 %s71, 1
      %p75 = scmp.eq.s32.totalorder %s16, 1
      %p76 = scmp.ne.s32.totalorder %s71, %s73
      %p77 = scmp.eq.s32.totalorder %s16, 0
      %p78 = por %p76, %p77
      %p79 = scmp.ne.s32.totalorder %s71, %s73
      %p80 = scmp.eq.s32.totalorder %s21, 1
      %p81 = por %p79, %p80
      %p82 = scmp.ne.s32.totalorder %s73, %s74
      %p83 = scmp.eq.s32.totalorder %s21, 0
      %p84 = por %p82, %p83
      %p85 = scmp.ne.s32.totalorder %s73, %s74
      %p86 = scmp.eq.s32.totalorder %s22, 1
      %p87 = por %p85, %p86
      %p89 = scmp.ne.s32.totalorder %s74, %s88
      %p90 = scmp.eq.s32.totalorder %s22, 0
      %p91 = por %p89, %p90
      %s92 = ssub.s32 %s16, %s23
      %p93 = scmp.eq.s32.totalorder %s92, 0
      %s95 = sadd.s32 %s94, 1
      %s96 = scalar_select %p93, %s94, %s95
      %p99 = pneg %p93
      %p100 = scmp.eq.s32.totalorder %s16, 1
      %p101 = por %p99, %p100
      %p102 = scmp.ne.s32.totalorder %s94, %s97
      %p103 = scmp.eq.s32.totalorder %s16, 0
      %p104 = por %p102, %p103
      %p105 = scmp.ne.s32.totalorder %s94, %s97
      %p106 = scmp.eq.s32.totalorder %s21, 1
      %p107 = por %p105, %p106
      %p108 = scmp.ne.s32.totalorder %s97, %s98
      %p109 = scmp.eq.s32.totalorder %s21, 0
      %p110 = por %p108, %p109
      %p111 = scmp.ne.s32.totalorder %s97, %s98
      %p112 = scmp.eq.s32.totalorder %s22, 1
      %p113 = por %p111, %p112
      %p115 = scmp.ne.s32.totalorder %s98, %s114
      %p116 = scmp.eq.s32.totalorder %s22, 0
      %p117 = por %p115, %p116
      %p118 = scmp.le.s32.totalorder 1, %s16
      %p119 = scmp.lt.s32.totalorder %s16, 3
      %p120 = pnand %p118, %p119
      %p121 = pneg %p120
      // Predicated region
      $region9: #{tpu_custom_call.1} parent=5 // pred_check
        _
      $region10: #{tpu_custom_call.1} parent=5 // pred_check_branch
        %123 = sbr.rel (%p120) target = $region12
      $region11: #{tpu_custom_call.1} parent=5 // pred_region
        %s124 = ssub.s32 %s16, 1
        // Predicated region
        $region13: #{tpu_custom_call.1} parent=11 // pred_check
          %p125 = pneg %p63
        $region14: #{tpu_custom_call.1} parent=11 // pred_check_branch
          %127 = sbr.rel (%p125) target = $region16
        $region15: #{tpu_custom_call.1} parent=11 // pred_region
          %s129 = ssub.s32 1024, 1024
          %130 = vsyncadd [#allocation6], %s129
          %s131 = sshll.u32 [#allocation5], 4
          %s132 = int_to_ptr.vmem [resolvable:$true] %s131
          %137 = dma.hbm_to_vmem [thread:$0]  %s1, 1024, %s132, [#allocation6], 64, 64, 4
        $region16: #{tpu_custom_call.1} parent=11 // pred_fallthru
          _
        // Predicated region
        $region17: #{tpu_custom_call.1} parent=11 // pred_check
          %p138 = pneg %p84
        $region18: #{tpu_custom_call.1} parent=11 // pred_check_branch
          %140 = sbr.rel (%p138) target = $region20
        $region19: #{tpu_custom_call.1} parent=11 // pred_region
          _
        $region20: #{tpu_custom_call.1} parent=11 // pred_fallthru
          _
      $region12: #{tpu_custom_call.1} parent=5 // pred_fallthru
        _
      %p141 = scmp.lt.s32.totalorder %s16, 2
      // Predicated region
      $region21: #{tpu_custom_call.1} parent=5 // pred_check
        %p142 = pneg %p141
      $region22: #{tpu_custom_call.1} parent=5 // pred_check_branch
        %144 = sbr.rel (%p142) target = $region24
      $region23: #{tpu_custom_call.1} parent=5 // pred_region
        // Predicated region
        $region25: #{tpu_custom_call.1} parent=23 // pred_check
          %p145 = pneg %p36
        $region26: #{tpu_custom_call.1} parent=23 // pred_check_branch
          %147 = sbr.rel (%p145) target = $region28
        $region27: #{tpu_custom_call.1} parent=23 // pred_region
          %s148 = sand.u32 %s26, 1
          %s149 = scalar_lea.sflag [#allocation3], %s148
          %s150 = sand.u32 %s26, 1
          %s151 = smul.addr %s150, 64
          %s152 = scalar_lea.vmem [#allocation2], %s151
          %s153 = smul.u32 8, %s16
          %s155 = ssub.s32 1024, 1024
          %156 = vsyncadd %s149, %s155
          %s157 = smul.addr %s153, 128
          %s158 = scalar_lea.hbm %s0, %s157
          %s159 = sshll.u32 %s152, 4
          %s160 = int_to_ptr.vmem [resolvable:$true] %s159
          %165 = dma.hbm_to_vmem [thread:$0]  %s158, 1024, %s160, %s149, 128, 128, 8
        $region28: #{tpu_custom_call.1} parent=23 // pred_fallthru
          _
      $region24: #{tpu_custom_call.1} parent=5 // pred_fallthru
        _
      %p166 = scmp.le.s32.totalorder 1, %s16
      %p167 = scmp.lt.s32.totalorder %s16, 3
      %p168 = pnand %p166, %p167
      %p169 = pneg %p168
      // Predicated region
      $region29: #{tpu_custom_call.1} parent=5 // pred_check
        _
      $region30: #{tpu_custom_call.1} parent=5 // pred_check_branch
        %171 = sbr.rel (%p168) target = $region32
      $region31: #{tpu_custom_call.1} parent=5 // pred_region
        %s172 = ssub.s32 %s16, 1
        %s173 = sand.u32 %s29, 1
        %s174 = scalar_lea.sflag [#allocation3], %s173
        %s175 = sand.u32 %s29, 1
        %s176 = smul.addr %s175, 64
        %s177 = scalar_lea.vmem [#allocation2], %s176
        // Predicated region
        $region33: #{tpu_custom_call.1} parent=31 // pred_check
          %p178 = pneg %p42
        $region34: #{tpu_custom_call.1} parent=31 // pred_check_branch
          %180 = sbr.rel (%p178) target = $region36
        $region35: #{tpu_custom_call.1} parent=31 // pred_region
          %181 = dma.done %s174, 1024
        $region36: #{tpu_custom_call.1} parent=31 // pred_fallthru
          _
        // Predicated region
        $region37: #{tpu_custom_call.1} parent=31 // pred_check
          %p182 = pneg %p63
        $region38: #{tpu_custom_call.1} parent=31 // pred_check_branch
          %184 = sbr.rel (%p182) target = $region40
        $region39: #{tpu_custom_call.1} parent=31 // pred_region
          %185 = dma.done [#allocation6], 1024
        $region40: #{tpu_custom_call.1} parent=31 // pred_fallthru
          _
        %s186 = sand.u32 %s29, 1
        %s187 = scalar_lea.sflag [#allocation3], %s186
        %s188 = sand.u32 %s29, 1
        %s189 = smul.addr %s188, 64
        %s190 = scalar_lea.vmem [#allocation2], %s189
        %p191 = pneg %p42
        %p192 = pneg %p39
        %p193 = pneg %p63
        %p194 = pneg %p60
        %p195 = pneg %p84
        %p196 = pneg %p81
        %p197 = pneg %p110
        %p198 = pneg %p107
        %s199 = sand.u32 %s97, 1
        %s200 = scalar_lea.sflag [#allocation4], %s199
        %s201 = sand.u32 %s97, 1
        %s202 = smul.addr %s201, 64
        %s203 = scalar_lea.vmem [#allocation7], %s202
        %s204 = smul.u32 8, %s21
        %s205 = smul.u32 8, %s21
        %v207 = vld [vmem:[%s177] sm:$0xff]
        %v208 = vld [vmem:[%s177 + $0x8] sm:$0xff]
        %v209 = vld [vmem:[%s177 + $0x10] sm:$0xff]
        %v210 = vld [vmem:[%s177 + $0x18] sm:$0xff]
        %v211 = vld [vmem:[%s177 + $0x20] sm:$0xff]
        %v212 = vld [vmem:[%s177 + $0x28] sm:$0xff]
        %v213 = vld [vmem:[%s177 + $0x30] sm:$0xff]
        %v214 = vld [vmem:[%s177 + $0x38] sm:$0xff]
        %215 = vadd.xlane.f32.xlu0 %v207
        %v216 = vpop.xlane.xlu0 %215
        %217 = vadd.xlane.f32.xlu0 %v208
        %v218 = vpop.xlane.xlu0 %217
        %219 = vadd.xlane.f32.xlu0 %v209
        %v220 = vpop.xlane.xlu0 %219
        %221 = vadd.xlane.f32.xlu0 %v210
        %v222 = vpop.xlane.xlu0 %221
        %223 = vadd.xlane.f32.xlu0 %v211
        %v224 = vpop.xlane.xlu0 %223
        %225 = vadd.xlane.f32.xlu0 %v212
        %v226 = vpop.xlane.xlu0 %225
        %227 = vadd.xlane.f32.xlu0 %v213
        %v228 = vpop.xlane.xlu0 %227
        %229 = vadd.xlane.f32.xlu0 %v214
        %v230 = vpop.xlane.xlu0 %229
        %v231 = vmul.f32 %v207, %v207
        %v232 = vmul.f32 %v208, %v208
        %v233 = vmul.f32 %v209, %v209
        %v234 = vmul.f32 %v210, %v210
        %v235 = vmul.f32 %v211, %v211
        %v236 = vmul.f32 %v212, %v212
        %v237 = vmul.f32 %v213, %v213
        %v238 = vmul.f32 %v214, %v214
        %239 = vadd.xlane.f32.xlu0 %v231
        %v240 = vpop.xlane.xlu0 %239
        %241 = vadd.xlane.f32.xlu0 %v232
        %v242 = vpop.xlane.xlu0 %241
        %243 = vadd.xlane.f32.xlu0 %v233
        %v244 = vpop.xlane.xlu0 %243
        %245 = vadd.xlane.f32.xlu0 %v234
        %v246 = vpop.xlane.xlu0 %245
        %247 = vadd.xlane.f32.xlu0 %v235
        %v248 = vpop.xlane.xlu0 %247
        %249 = vadd.xlane.f32.xlu0 %v236
        %v250 = vpop.xlane.xlu0 %249
        %251 = vadd.xlane.f32.xlu0 %v237
        %v252 = vpop.xlane.xlu0 %251
        %253 = vadd.xlane.f32.xlu0 %v238
        %v254 = vpop.xlane.xlu0 %253
        %v255 = vmul.f32 %v216, 0.0078125
        %v256 = vmul.f32 %v218, 0.0078125
        %v257 = vmul.f32 %v220, 0.0078125
        %v258 = vmul.f32 %v222, 0.0078125
        %v259 = vmul.f32 %v224, 0.0078125
        %v260 = vmul.f32 %v226, 0.0078125
        %v261 = vmul.f32 %v228, 0.0078125
        %v262 = vmul.f32 %v230, 0.0078125
        %v263 = vmul.f32 %v240, 0.0078125
        %v264 = vmul.f32 %v242, 0.0078125
        %v265 = vmul.f32 %v244, 0.0078125
        %v266 = vmul.f32 %v246, 0.0078125
        %v267 = vmul.f32 %v248, 0.0078125
        %v268 = vmul.f32 %v250, 0.0078125
        %v269 = vmul.f32 %v252, 0.0078125
        %v270 = vmul.f32 %v254, 0.0078125
        %v271 = vmul.f32 %v255, %v255
        %v272 = vmul.f32 %v256, %v256
        %v273 = vmul.f32 %v257, %v257
        %v274 = vmul.f32 %v258, %v258
        %v275 = vmul.f32 %v259, %v259
        %v276 = vmul.f32 %v260, %v260
        %v277 = vmul.f32 %v261, %v261
        %v278 = vmul.f32 %v262, %v262
        %v279 = vsub.f32 %v263, %v271
        %v280 = vsub.f32 %v264, %v272
        %v281 = vsub.f32 %v265, %v273
        %v282 = vsub.f32 %v266, %v274
        %v283 = vsub.f32 %v267, %v275
        %v284 = vsub.f32 %v268, %v276
        %v285 = vsub.f32 %v269, %v277
        %v286 = vsub.f32 %v270, %v278
        %v287 = vsub.f32 %v207, %v255
        %v288 = vsub.f32 %v208, %v256
        %v289 = vsub.f32 %v209, %v257
        %v290 = vsub.f32 %v210, %v258
        %v291 = vsub.f32 %v211, %v259
        %v292 = vsub.f32 %v212, %v260
        %v293 = vsub.f32 %v213, %v261
        %v294 = vsub.f32 %v214, %v262
        %v295 = vadd.f32 %v279, 1e-05
        %v296 = vadd.f32 %v280, 1e-05
        %v297 = vadd.f32 %v281, 1e-05
        %v298 = vadd.f32 %v282, 1e-05
        %v299 = vadd.f32 %v283, 1e-05
        %v300 = vadd.f32 %v284, 1e-05
        %v301 = vadd.f32 %v285, 1e-05
        %v302 = vadd.f32 %v286, 1e-05
        %v303 = vrsqrt.pop %v295
        %v304 = vrsqrt.pop %v296
        %v305 = vrsqrt.pop %v297
        %v306 = vrsqrt.pop %v298
        %v307 = vrsqrt.pop %v299
        %v308 = vrsqrt.pop %v300
        %v309 = vrsqrt.pop %v301
        %v310 = vrsqrt.pop %v302
        %v311 = vmul.f32 %v287, %v303
        %v312 = vmul.f32 %v288, %v304
        %v313 = vmul.f32 %v289, %v305
        %v314 = vmul.f32 %v290, %v306
        %v315 = vmul.f32 %v291, %v307
        %v316 = vmul.f32 %v292, %v308
        %v317 = vmul.f32 %v293, %v309
        %v318 = vmul.f32 %v294, %v310
        %v319 = vpack.c.bf16 %v312, %v311
        %v320 = vpack.c.bf16 %v314, %v313
        %v321 = vpack.c.bf16 %v316, %v315
        %v322 = vpack.c.bf16 %v318, %v317
        %v323 = vld [vmem:[#allocation5] sm:$0xf]
        %v324 = vld [vmem:[#allocation5 + $0x4] sm:$0xf]
        %v325 = vld [vmem:[#allocation5 + $0x8] sm:$0xf]
        %v326 = vld [vmem:[#allocation5 + $0xc] sm:$0xf]
        %v327 = vld [vmem:[#allocation5 + $0x10] sm:$0xf]
        %v328 = vld [vmem:[#allocation5 + $0x14] sm:$0xf]
        %v329 = vld [vmem:[#allocation5 + $0x18] sm:$0xf]
        %v330 = vld [vmem:[#allocation5 + $0x1c] sm:$0xf]
        %v331 = vld [vmem:[#allocation5 + $0x20] sm:$0xf]
        %v332 = vld [vmem:[#allocation5 + $0x24] sm:$0xf]
        %v333 = vld [vmem:[#allocation5 + $0x28] sm:$0xf]
        %v334 = vld [vmem:[#allocation5 + $0x2c] sm:$0xf]
        %v335 = vld [vmem:[#allocation5 + $0x30] sm:$0xf]
        %v336 = vld [vmem:[#allocation5 + $0x34] sm:$0xf]
        %v337 = vld [vmem:[#allocation5 + $0x38] sm:$0xf]
        %v338 = vld [vmem:[#allocation5 + $0x3c] sm:$0xf]
        %v339 = vld [vmem:[%s2] sm:$0x1]
        %v341 = vlaneseq
        %v342 = vshrl.u32 %v341, 7
        %v343 = vsub.s32 0, %v342
        %v344 = vrot.slane %v339, %v343
        %v362 = vunpack.c.l.b16 %v323
        %v363 = vunpack.c.l.b16 %v324
        %v364 = vunpack.c.l.b16 %v325
        %v365 = vunpack.c.l.b16 %v326
        %v366 = vunpack.c.l.b16 %v327
        %v367 = vunpack.c.l.b16 %v328
        %v368 = vunpack.c.l.b16 %v329
        %v369 = vunpack.c.l.b16 %v330
        %v370 = vunpack.c.l.b16 %v331
        %v371 = vunpack.c.l.b16 %v332
        %v372 = vunpack.c.l.b16 %v333
        %v373 = vunpack.c.l.b16 %v334
        %v374 = vunpack.c.l.b16 %v335
        %v375 = vunpack.c.l.b16 %v336
        %v376 = vunpack.c.l.b16 %v337
        %v377 = vunpack.c.l.b16 %v338
        %v378 = vpack.c.b16 %v363, %v362
        %v379 = vpack.c.b16 %v365, %v364
        %v380 = vpack.c.b16 %v367, %v366
        %v381 = vpack.c.b16 %v369, %v368
        %v382 = vpack.c.b16 %v371, %v370
        %v383 = vpack.c.b16 %v373, %v372
        %v384 = vpack.c.b16 %v375, %v374
        %v385 = vpack.c.b16 %v377, %v376
        %394 = vmatprep.subr.bf16.mxu0 0
        %395 = vmatpush1.bf16.msra.mxu0 %v378
        %396 = vmatprep.subr.bf16.mxu0 0
        %397 = vmatpush1.bf16.msra.mxu0 %v379
        %398 = vmatprep.subr.bf16.mxu0 0
        %399 = vmatpush1.bf16.msra.mxu0 %v380
        %400 = vmatprep.subr.bf16.mxu0 0
        %401 = vmatpush1.bf16.msra.mxu0 %v381
        %402 = vmatprep.subr.bf16.mxu0 0
        %403 = vmatpush1.bf16.msra.mxu0 %v382
        %404 = vmatprep.subr.bf16.mxu0 0
        %405 = vmatpush1.bf16.msra.mxu0 %v383
        %406 = vmatprep.subr.bf16.mxu0 0
        %407 = vmatpush1.bf16.msra.mxu0 %v384
        %408 = vmatprep.subr.bf16.mxu0 0
        %409 = vmatpush1.bf16.msra.mxu0 %v385
        %410 = vmatprep.subr.bf16.mxu0 0
        %411 = vmatpush1.bf16.msra.mxu0 0
        %412 = vmatprep.subr.bf16.mxu0 0
        %413 = vmatpush1.bf16.msra.mxu0 0
        %414 = vmatprep.subr.bf16.mxu0 0
        %415 = vmatpush1.bf16.msra.mxu0 0
        %416 = vmatprep.subr.bf16.mxu0 0
        %417 = vmatpush1.bf16.msra.mxu0 0
        %418 = vmatprep.subr.bf16.mxu0 0
        %419 = vmatpush1.bf16.msra.mxu0 0
        %420 = vmatprep.subr.bf16.mxu0 0
        %421 = vmatpush1.bf16.msra.mxu0 0
        %422 = vmatprep.subr.bf16.mxu0 0
        %423 = vmatpush1.bf16.msra.mxu0 0
        %424 = vmatprep.subr.bf16.mxu0 0
        %425 = vmatpush1.bf16.msra.mxu0 0
        %426 = vmatprep.mubr.bf16.mxu0 0
        %427 = vmatmul.mubr.bf16.gmra.mrb[0].mxu0 %v319
        %v428 = vpop.f32.mrb[0].mxu0
        %v429 = vadd.f32 %v344, %v428
        %v430 = vpop.f32.mrb[0].mxu0
        %v431 = vpop.f32.mrb[0].mxu0
        %v432 = vadd.f32 %v344, %v431
        %v433 = vpop.f32.mrb[0].mxu0
        %434 = vmatprep.mubr.bf16.mxu0 0
        %435 = vmatmul.mubr.bf16.gmra.mrb[0].mxu0 %v320
        %v436 = vpop.f32.mrb[0].mxu0
        %v437 = vadd.f32 %v344, %v436
        %v438 = vpop.f32.mrb[0].mxu0
        %v439 = vpop.f32.mrb[0].mxu0
        %v440 = vadd.f32 %v344, %v439
        %v441 = vpop.f32.mrb[0].mxu0
        %442 = vmatprep.mubr.bf16.mxu0 0
        %443 = vmatmul.mubr.bf16.gmra.mrb[0].mxu0 %v321
        %v444 = vpop.f32.mrb[0].mxu0
        %v445 = vadd.f32 %v344, %v444
        %v446 = vpop.f32.mrb[0].mxu0
        %v447 = vpop.f32.mrb[0].mxu0
        %v448 = vadd.f32 %v344, %v447
        %v449 = vpop.f32.mrb[0].mxu0
        %450 = vmatprep.mubr.bf16.mxu0 0
        %451 = vmatmul.mubr.bf16.gmra.mrb[0].mxu0 %v322
        %v452 = vpop.f32.mrb[0].mxu0
        %v453 = vadd.f32 %v344, %v452
        %v454 = vpop.f32.mrb[0].mxu0
        %v455 = vpop.f32.mrb[0].mxu0
        %v456 = vadd.f32 %v344, %v455
        %v457 = vpop.f32.mrb[0].mxu0
        %458 = vdwg.mxu0
        %459 = vst [vmem:[%s203] sm:$0xff] %v429
        %460 = vst [vmem:[%s203 + $0x8] sm:$0xff] %v432
        %461 = vst [vmem:[%s203 + $0x10] sm:$0xff] %v437
        %462 = vst [vmem:[%s203 + $0x18] sm:$0xff] %v440
        %463 = vst [vmem:[%s203 + $0x20] sm:$0xff] %v445
        %464 = vst [vmem:[%s203 + $0x28] sm:$0xff] %v448
        %465 = vst [vmem:[%s203 + $0x30] sm:$0xff] %v453
        %466 = vst [vmem:[%s203 + $0x38] sm:$0xff] %v456
        %s467 = sand.u32 %s97, 1
        %s468 = scalar_lea.sflag [#allocation4], %s467
        %s469 = sand.u32 %s97, 1
        %s470 = smul.addr %s469, 64
        %s471 = scalar_lea.vmem [#allocation7], %s470
        // Predicated region
        $region41: #{tpu_custom_call.1} parent=31 // pred_check
          %p472 = pneg %p107
        $region42: #{tpu_custom_call.1} parent=31 // pred_check_branch
          %474 = sbr.rel (%p472) target = $region44
        $region43: #{tpu_custom_call.1} parent=31 // pred_region
          %s475 = smul.u32 8, %s21
          %s477 = ssub.s32 1024, 1024
          %478 = vsyncadd %s468, %s477
          %s479 = smul.addr %s475, 128
          %s480 = scalar_lea.hbm %s3, %s479
          %s481 = sshll.u32 %s471, 4
          %s482 = int_to_ptr.vmem [resolvable:$true] %s481
          %487 = dma.vmem_to_hbm [thread:$0]  %s482, 1024, %s480, %s468, 128, 128, 8
        $region44: #{tpu_custom_call.1} parent=31 // pred_fallthru
          _
      $region32: #{tpu_custom_call.1} parent=5 // pred_fallthru
        _
      %p488 = scmp.le.s32.totalorder 2, %s16
      // Predicated region
      $region45: #{tpu_custom_call.1} parent=5 // pred_check
        %p489 = pneg %p488
      $region46: #{tpu_custom_call.1} parent=5 // pred_check_branch
        %491 = sbr.rel (%p489) target = $region48
      $region47: #{tpu_custom_call.1} parent=5 // pred_region
        %s492 = ssub.s32 %s16, 2
        // Predicated region
        $region49: #{tpu_custom_call.1} parent=47 // pred_check
          %p493 = pneg %p113
        $region50: #{tpu_custom_call.1} parent=47 // pred_check_branch
          %495 = sbr.rel (%p493) target = $region52
        $region51: #{tpu_custom_call.1} parent=47 // pred_region
          %s496 = sand.u32 %s98, 1
          %s497 = scalar_lea.sflag [#allocation4], %s496
          %s498 = sand.u32 %s98, 1
          %s499 = smul.addr %s498, 64
          %s500 = scalar_lea.vmem [#allocation7], %s499
          %501 = dma.done %s497, 1024
        $region52: #{tpu_custom_call.1} parent=47 // pred_fallthru
          _
      $region48: #{tpu_custom_call.1} parent=5 // pred_fallthru
        _
    $region6: #{tpu_custom_call.1} parent=1 // loop_footer
      %s20 = sadd.s32 1, %s16
    $region7: #{tpu_custom_call.1} parent=1 // loop_footer_branch
      %15 = sbr.rel target = $region3
    $region8: #{tpu_custom_call.1} parent=1 // loop_exit
      _
    %502 = vsyncpa [#allocation3], 1
    %s503 = scalar_lea.sflag [#allocation3], 1
    %504 = vsyncpa %s503, 1
    %505 = vsyncpa [#allocation6], 1
    %506 = vsyncpa [#allocation4], 1
    %s507 = scalar_lea.sflag [#allocation4], 1
    %508 = vsyncpa %s507, 1

</llo_original>
